<compile_context>
chip_gen: v7x
topology: tpu7x:2x2x1
jax: 0.10.0
libtpu: 0.0.40
codegen_flags: <defaults>
</compile_context>

<pallas_src>
import functools

import jax
import jax.numpy as jnp
from jax import lax
from jax.experimental import pallas as pl
from jax.experimental.pallas import tpu as pltpu

NUM_CLASSES = 3
FOCAL_ALPHA = 0.25
FOCAL_GAMMA = 2.0  # kornia default


def _east_loss_kernel(yt_ref, yp_ref, out_ref, *, num_classes, alpha):
    """Accumulates [focal_sum, iou_num, score_sum, l1_sum] into out_ref rows 0..3."""
    i = pl.program_id(1)  # reduction axis (last grid axis, "arbitrary")

    @pl.when(i == 0)
    def _():
        out_ref[...] = jnp.zeros_like(out_ref)

    yt = yt_ref[...].astype(jnp.float32)   # (B, 1+4, T, L)
    yp = yp_ref[...].astype(jnp.float32)   # (B, C+4, T, L)

    label = yt[:, 0]                        # (B, T, L) float label map
    box_true = yt[:, 1:5]                   # (B, 4, T, L)
    logits = yp[:, :num_classes]            # (B, C, T, L)
    box_pred = yp[:, num_classes:]          # (B, 4, T, L)

    # ---------------- focal loss (softmax over class dim, gamma = 2) --------
    m = jnp.max(logits, axis=1, keepdims=True)
    z = logits - m
    ez = jnp.exp(z)                          # reused for both p and lse
    sum_ez = jnp.sum(ez, axis=1)             # (B, T, L)
    lbl = label.astype(jnp.int32)            # == y_true[:, 0].long()
    cls_ids = lax.broadcasted_iota(jnp.int32, logits.shape, 1)
    onehot = (cls_ids == lbl[:, None]).astype(jnp.float32)
    z_t = jnp.sum(onehot * z, axis=1)        # target-class shifted logit
    ez_t = jnp.sum(onehot * ez, axis=1)      # target-class exp
    p_t = ez_t / sum_ez                      # softmax prob of target class
    log_p_t = z_t - jnp.log(sum_ez)          # log-softmax of target class
    one_m = 1.0 - p_t
    focal_sum = jnp.sum(-alpha * (one_m * one_m) * log_p_t)   # gamma == 2.0

    # ---------------- binary score map (1 * (y_true[:,0] > 0)) --------------
    score = (label > 0).astype(jnp.float32)  # (B, T, L)
    score_sum = jnp.sum(score)

    # ---------------- IoU / EAST aabb loss ----------------------------------
    d1_t, d2_t, d3_t, d4_t = box_true[:, 0], box_true[:, 1], box_true[:, 2], box_true[:, 3]
    d1_p, d2_p, d3_p, d4_p = box_pred[:, 0], box_pred[:, 1], box_pred[:, 2], box_pred[:, 3]
    area_t = (d1_t + d3_t) * (d2_t + d4_t)
    area_p = (d1_p + d3_p) * (d2_p + d4_p)
    w_int = jnp.minimum(d2_t, d2_p) + jnp.minimum(d4_t, d4_p)
    h_int = jnp.minimum(d1_t, d1_p) + jnp.minimum(d3_t, d3_p)
    area_i = w_int * h_int
    area_u = area_t + area_p - area_i
    aabb = -jnp.log((area_i + 1.0) / (area_u + 1.0))          # (B, T, L)
    # PyTorch broadcasts aabb (B,1,H,W) against score (B,H,W) -> (B,B,H,W);
    # its global sum equals sum_pixels[ (sum_b aabb) * (sum_b score) ].
    iou_num = jnp.sum(jnp.sum(aabb, axis=0) * jnp.sum(score, axis=0))

    # ---------------- SmoothL1 over active (score == 1) pixels --------------
    diff = box_pred - box_true
    absd = jnp.abs(diff)
    huber = jnp.where(absd < 1.0, 0.5 * diff * diff, absd - 0.5)
    l1_sum = jnp.sum(huber * score[:, None])

    # ---------------- accumulate partial sums into the resident output ------
    row = lax.broadcasted_iota(jnp.int32, out_ref.shape, 1)    # sublane id of (1,8,128)
    out_ref[...] += (jnp.where(row == 0, focal_sum, 0.0)
                     + jnp.where(row == 1, iou_num, 0.0)
                     + jnp.where(row == 2, score_sum, 0.0)
                     + jnp.where(row == 3, l1_sum, 0.0))


def _choose_tiling(n_chunks, cap_chunks):
    """Pick (num_splits, tile_chunks) s.t. n_chunks = num_splits*steps*tile_chunks
    with tile_chunks % 8 == 0 (or == n_chunks when num_splits == 1)."""
    def pick(ns):
        if n_chunks % ns:
            return None
        per = n_chunks // ns
        if ns == 1 and per <= cap_chunks:
            return per                       # full extent block (always legal)
        best, t = None, 8
        limit = min(per, cap_chunks)
        while t <= limit:
            if per % t == 0:
                best = t
            t += 8
        return best

    for ns in (2, 1):                        # prefer 2-way split (v7x megacore)
        t = pick(ns)
        if t is not None:
            return ns, t
    return 1, n_chunks                       # fallback: single full block


def multilabel_east_loss(y_true, y_pred, *, num_classes=NUM_CLASSES,
                         iou_weight=1.0, l1_weight=1.0, focal_weight=1.0,
                         focal_alpha=FOCAL_ALPHA):
    B, Ct, H, W = y_true.shape
    Cp = num_classes + 4
    assert Ct == 5 and y_pred.shape == (B, Cp, H, W)
    S = H * W

    # ---- lane-dense spatial layout: (B, C, H, W) -> (B, C, S/128, 128) ------
    if S % 128 == 0:
        lane = 128
        n_chunks = S // 128
    else:
        # TODO(synk): spatial sizes not divisible by 128 fall back to a single
        # un-tiled spatial block (lane axis = H*W).
        lane = S
        n_chunks = 1
    yt = y_true.reshape(B, Ct, n_chunks, lane)
    yp = y_pred.reshape(B, Cp, n_chunks, lane)

    # ---- VMEM-aware tile sizing (v5e/v6e: 128 MiB, v7x: 64 MiB physical) ----
    try:
        vmem_cap = int(pltpu.get_tpu_info().vmem_capacity_bytes)
    except Exception:
        vmem_cap = 64 * 1024 * 1024
    scoped = max(16 << 20, min(vmem_cap // 2, 48 << 20))  # explicit scoped VMEM budget
    bytes_per_chunk = B * (Ct + Cp) * lane * 4            # one spatial chunk, both inputs
    cap_chunks = max(8, ((scoped // 4) // max(bytes_per_chunk, 1)) // 8 * 8)

    num_splits, t_chunks = _choose_tiling(n_chunks, cap_chunks)
    steps = n_chunks // (num_splits * t_chunks)
    grid = (num_splits, steps)               # ("parallel", "arbitrary")

    kern = functools.partial(_east_loss_kernel, num_classes=num_classes,
                             alpha=focal_alpha)
    sums = pl.pallas_call(
        kern,
        out_shape=jax.ShapeDtypeStruct((num_splits, 8, 128), jnp.float32),
        grid_spec=pltpu.PrefetchScalarGridSpec(
            num_scalar_prefetch=0,
            grid=grid,
            in_specs=[
                pl.BlockSpec((B, Ct, t_chunks, lane),
                             lambda c, i: (0, 0, c * steps + i, 0)),
                pl.BlockSpec((B, Cp, t_chunks, lane),
                             lambda c, i: (0, 0, c * steps + i, 0)),
            ],
            out_specs=pl.BlockSpec((1, 8, 128), lambda c, i: (c, 0, 0)),
        ),
        compiler_params=pltpu.CompilerParams(
            dimension_semantics=("parallel", "arbitrary"),
            vmem_limit_bytes=int(scoped)),
    )(yt, yp)

    s = jnp.sum(sums[:, :, 0], axis=0)       # combine per-core partial sums
    focal = s[0] / (B * H * W)               # FocalLoss(reduction='mean')
    iou = s[1] / s[2]                        # sum(aabb * score) / score.sum()
    l1 = s[3] / (4.0 * s[2])                 # SmoothL1Loss(mean) over actives
    losses = {"focal": focal_weight * focal,
              "iou": iou_weight * iou,
              "l1": l1_weight * l1}
    loss = losses["focal"] + losses["iou"] + losses["l1"]
    return loss, losses


def _reference(y_true, y_pred):
    """Pure-JAX mirror of the PyTorch forward (same default flags)."""
    label = y_true[:, 0]
    lbl = label.astype(jnp.int32)
    logits = y_pred[:, :NUM_CLASSES]
    log_p = jax.nn.log_softmax(logits, axis=1)
    p = jnp.exp(log_p)
    onehot = jax.nn.one_hot(lbl, NUM_CLASSES, axis=1)
    focal = jnp.mean(jnp.sum(onehot * (-FOCAL_ALPHA * (1.0 - p) ** 2 * log_p), axis=1))

    score = (label > 0).astype(jnp.float32)
    bt, bp = y_true[:, 1:], y_pred[:, NUM_CLASSES:]
    d1t, d2t, d3t, d4t = jnp.split(bt, 4, 1)
    d1p, d2p, d3p, d4p = jnp.split(bp, 4, 1)
    area_t = (d1t + d3t) * (d2t + d4t)
    area_p = (d1p + d3p) * (d2p + d4p)
    wi = jnp.minimum(d2t, d2p) + jnp.minimum(d4t, d4p)
    hi = jnp.minimum(d1t, d1p) + jnp.minimum(d3t, d3p)
    ai = wi * hi
    au = area_t + area_p - ai
    aabb = -jnp.log((ai + 1.0) / (au + 1.0))                 # (B,1,H,W)
    iou = jnp.sum(aabb * score) / jnp.sum(score)             # broadcast quirk kept
    diff = bp - bt
    ad = jnp.abs(diff)
    hub = jnp.where(ad < 1.0, 0.5 * diff * diff, ad - 0.5)
    mask = jnp.broadcast_to(score[:, None], hub.shape)
    l1 = jnp.sum(hub * mask) / jnp.sum(mask)
    return focal + iou + l1, {"focal": focal, "iou": iou, "l1": l1}


if __name__ == "__main__":
    key = jax.random.PRNGKey(0)
    k1, k2, k3, k4 = jax.random.split(key, 4)
    B, H, W = 2, 16, 16

    labels = jax.random.randint(k1, (B, 1, H, W), 0, NUM_CLASSES).astype(jnp.float32)
    boxes_t = jax.random.uniform(k2, (B, 4, H, W), minval=0.0, maxval=4.0)
    y_true = jnp.concatenate([labels, boxes_t], axis=1)          # (2, 5, 16, 16)

    logits = jax.random.normal(k3, (B, NUM_CLASSES, H, W), dtype=jnp.float32)
    boxes_p = jax.random.uniform(k4, (B, 4, H, W), minval=0.0, maxval=4.0)
    y_pred = jnp.concatenate([logits, boxes_p], axis=1)          # (2, 7, 16, 16)

    loss, losses = jax.block_until_ready(jax.jit(multilabel_east_loss)(y_true, y_pred))
    ref_loss, ref_losses = _reference(y_true, y_pred)

    assert bool(jnp.isfinite(loss)), "non-finite loss"
    assert jnp.allclose(loss, ref_loss, rtol=1e-4, atol=1e-5), (loss, ref_loss)
    for k in losses:
        assert jnp.allclose(losses[k], ref_losses[k], rtol=1e-4, atol=1e-5), (
            k, losses[k], ref_losses[k])

    print("KERNEL_OK")
</pallas_src>

<mosaic_0001>
module attributes {stable_mosaic.version = 11 : i64} {
  func.func @_east_loss_kernel(%arg0: i32, %arg1: i32, %arg2: memref<2x5x2x128xf32, #tpu.memory_space<vmem>>, %arg3: memref<2x7x2x128xf32, #tpu.memory_space<vmem>>, %arg4: memref<1x8x128xf32, #tpu.memory_space<vmem>>) attributes {dimension_semantics = [#tpu.dimension_semantics<parallel>, #tpu.dimension_semantics<arbitrary>], iteration_bounds = array<i64: 1, 1>, scalar_prefetch = 0 : i64, scratch_operands = 0 : i64, tpu.core_type = #tpu.core_type<tc>, window_params = [{transform_indices = @transform_0, window_bounds = array<i64: 2, 5, 2, 128>}, {transform_indices = @transform_1, window_bounds = array<i64: 2, 7, 2, 128>}, {transform_indices = @transform_2, window_bounds = array<i64: 1, 8, 128>}]} {
    %c0_i32 = arith.constant 0 : i32
    %0 = arith.cmpi eq, %arg1, %c0_i32 : i32
    %1 = arith.extui %0 : i1 to i32
    %c0_i32_0 = arith.constant 0 : i32
    %2 = arith.cmpi ne, %1, %c0_i32_0 : i32
    scf.if %2 {
      %cst_37 = arith.constant 0.000000e+00 : f32
      %138 = vector.broadcast %cst_37 : f32 to vector<1x8x128xf32>
      %c0_38 = arith.constant 0 : index
      %c0_39 = arith.constant 0 : index
      %c0_40 = arith.constant 0 : index
      %139 = vector.load %arg4[%c0_38, %c0_39, %c0_40] : memref<1x8x128xf32, #tpu.memory_space<vmem>>, vector<1x8x128xf32>
      tpu.vector_store %arg4[%c0_38, %c0_39, %c0_40], %138 {strides = array<i32>} : memref<1x8x128xf32, #tpu.memory_space<vmem>>, vector<1x8x128xf32>,
    } else {
    }
    %c0 = arith.constant 0 : index
    %c0_1 = arith.constant 0 : index
    %c0_2 = arith.constant 0 : index
    %c0_3 = arith.constant 0 : index
    %3 = vector.load %arg2[%c0, %c0_1, %c0_2, %c0_3] : memref<2x5x2x128xf32, #tpu.memory_space<vmem>>, vector<2x5x2x128xf32>
    %c0_4 = arith.constant 0 : index
    %c0_5 = arith.constant 0 : index
    %c0_6 = arith.constant 0 : index
    %c0_7 = arith.constant 0 : index
    %4 = vector.load %arg3[%c0_4, %c0_5, %c0_6, %c0_7] : memref<2x7x2x128xf32, #tpu.memory_space<vmem>>, vector<2x7x2x128xf32>
    %5 = vector.extract_strided_slice %3 {offsets = [0, 0, 0, 0], sizes = [2, 1, 2, 128], strides = [1, 1, 1, 1]} : vector<2x5x2x128xf32> to vector<2x1x2x128xf32>
    %6 = vector.shape_cast %5 : vector<2x1x2x128xf32> to vector<2x2x128xf32>
    %7 = vector.extract_strided_slice %3 {offsets = [0, 1, 0, 0], sizes = [2, 4, 2, 128], strides = [1, 1, 1, 1]} : vector<2x5x2x128xf32> to vector<2x4x2x128xf32>
    %8 = vector.extract_strided_slice %4 {offsets = [0, 0, 0, 0], sizes = [2, 3, 2, 128], strides = [1, 1, 1, 1]} : vector<2x7x2x128xf32> to vector<2x3x2x128xf32>
    %9 = vector.extract_strided_slice %4 {offsets = [0, 3, 0, 0], sizes = [2, 4, 2, 128], strides = [1, 1, 1, 1]} : vector<2x7x2x128xf32> to vector<2x4x2x128xf32>
    %cst = arith.constant dense<0xFF800000> : vector<2x2x128xf32>
    %10 = vector.multi_reduction <maximumf>, %8, %cst [1] : vector<2x3x2x128xf32> to vector<2x2x128xf32>
    %11 = vector.shape_cast %10 : vector<2x2x128xf32> to vector<2x1x2x128xf32>
    %12 = vector.broadcast %11 : vector<2x1x2x128xf32> to vector<2x3x2x128xf32>
    %13 = arith.subf %8, %12 : vector<2x3x2x128xf32>
    %14 = math.exp %13 : vector<2x3x2x128xf32>
    %cst_8 = arith.constant dense<0.000000e+00> : vector<2x2x128xf32>
    %15 = vector.multi_reduction <add>, %14, %cst_8 [1] : vector<2x3x2x128xf32> to vector<2x2x128xf32>
    %16 = arith.fptosi %6 : vector<2x2x128xf32> to vector<2x2x128xi32>
    %17 = tpu.iota {dimensions = array<i32: 1>} : vector<2x3x2x128xi32>
    %18 = vector.shape_cast %16 : vector<2x2x128xi32> to vector<2x1x2x128xi32>
    %19 = vector.broadcast %18 : vector<2x1x2x128xi32> to vector<2x3x2x128xi32>
    %20 = arith.cmpi eq, %17, %19 : vector<2x3x2x128xi32>
    %21 = arith.extui %20 : vector<2x3x2x128xi1> to vector<2x3x2x128xi32>
    %22 = arith.sitofp %21 : vector<2x3x2x128xi32> to vector<2x3x2x128xf32>
    %23 = arith.mulf %22, %13 : vector<2x3x2x128xf32>
    %cst_9 = arith.constant dense<0.000000e+00> : vector<2x2x128xf32>
    %24 = vector.multi_reduction <add>, %23, %cst_9 [1] : vector<2x3x2x128xf32> to vector<2x2x128xf32>
    %25 = arith.mulf %22, %14 : vector<2x3x2x128xf32>
    %cst_10 = arith.constant dense<0.000000e+00> : vector<2x2x128xf32>
    %26 = vector.multi_reduction <add>, %25, %cst_10 [1] : vector<2x3x2x128xf32> to vector<2x2x128xf32>
    %27 = arith.divf %26, %15 : vector<2x2x128xf32>
    %28 = math.log %15 : vector<2x2x128xf32>
    %29 = arith.subf %24, %28 : vector<2x2x128xf32>
    %cst_11 = arith.constant 1.000000e+00 : f32
    %30 = vector.broadcast %cst_11 : f32 to vector<2x2x128xf32>
    %31 = arith.subf %30, %27 : vector<2x2x128xf32>
    %32 = arith.mulf %31, %31 : vector<2x2x128xf32>
    %cst_12 = arith.constant -2.500000e-01 : f32
    %33 = vector.broadcast %cst_12 : f32 to vector<2x2x128xf32>
    %34 = arith.mulf %33, %32 : vector<2x2x128xf32>
    %35 = arith.mulf %34, %29 : vector<2x2x128xf32>
    %36 = vector.shape_cast %35 : vector<2x2x128xf32> to vector<1x2x2x128xf32>
    %cst_13 = arith.constant dense<0.000000e+00> : vector<1xf32>
    %37 = vector.multi_reduction <add>, %36, %cst_13 [1, 2, 3] : vector<1x2x2x128xf32> to vector<1xf32>
    %38 = vector.shape_cast %37 : vector<1xf32> to vector<1x1x1x1xf32>
    %39 = vector.extract %38[0, 0, 0, 0] : f32 from vector<1x1x1x1xf32>
    %cst_14 = arith.constant 0.000000e+00 : f32
    %40 = vector.broadcast %cst_14 : f32 to vector<2x2x128xf32>
    %41 = arith.cmpf ogt, %6, %40 : vector<2x2x128xf32>
    %42 = arith.extui %41 : vector<2x2x128xi1> to vector<2x2x128xi32>
    %43 = arith.sitofp %42 : vector<2x2x128xi32> to vector<2x2x128xf32>
    %44 = vector.shape_cast %43 : vector<2x2x128xf32> to vector<1x2x2x128xf32>
    %cst_15 = arith.constant dense<0.000000e+00> : vector<1xf32>
    %45 = vector.multi_reduction <add>, %44, %cst_15 [1, 2, 3] : vector<1x2x2x128xf32> to vector<1xf32>
    %46 = vector.shape_cast %45 : vector<1xf32> to vector<1x1x1x1xf32>
    %47 = vector.extract %46[0, 0, 0, 0] : f32 from vector<1x1x1x1xf32>
    %48 = vector.extract_strided_slice %7 {offsets = [0, 0, 0, 0], sizes = [2, 1, 2, 128], strides = [1, 1, 1, 1]} : vector<2x4x2x128xf32> to vector<2x1x2x128xf32>
    %49 = vector.shape_cast %48 : vector<2x1x2x128xf32> to vector<2x2x128xf32>
    %50 = vector.extract_strided_slice %7 {offsets = [0, 1, 0, 0], sizes = [2, 1, 2, 128], strides = [1, 1, 1, 1]} : vector<2x4x2x128xf32> to vector<2x1x2x128xf32>
    %51 = vector.shape_cast %50 : vector<2x1x2x128xf32> to vector<2x2x128xf32>
    %52 = vector.extract_strided_slice %7 {offsets = [0, 2, 0, 0], sizes = [2, 1, 2, 128], strides = [1, 1, 1, 1]} : vector<2x4x2x128xf32> to vector<2x1x2x128xf32>
    %53 = vector.shape_cast %52 : vector<2x1x2x128xf32> to vector<2x2x128xf32>
    %54 = vector.extract_strided_slice %7 {offsets = [0, 3, 0, 0], sizes = [2, 1, 2, 128], strides = [1, 1, 1, 1]} : vector<2x4x2x128xf32> to vector<2x1x2x128xf32>
    %55 = vector.shape_cast %54 : vector<2x1x2x128xf32> to vector<2x2x128xf32>
    %56 = vector.extract_strided_slice %9 {offsets = [0, 0, 0, 0], sizes = [2, 1, 2, 128], strides = [1, 1, 1, 1]} : vector<2x4x2x128xf32> to vector<2x1x2x128xf32>
    %57 = vector.shape_cast %56 : vector<2x1x2x128xf32> to vector<2x2x128xf32>
    %58 = vector.extract_strided_slice %9 {offsets = [0, 1, 0, 0], sizes = [2, 1, 2, 128], strides = [1, 1, 1, 1]} : vector<2x4x2x128xf32> to vector<2x1x2x128xf32>
    %59 = vector.shape_cast %58 : vector<2x1x2x128xf32> to vector<2x2x128xf32>
    %60 = vector.extract_strided_slice %9 {offsets = [0, 2, 0, 0], sizes = [2, 1, 2, 128], strides = [1, 1, 1, 1]} : vector<2x4x2x128xf32> to vector<2x1x2x128xf32>
    %61 = vector.shape_cast %60 : vector<2x1x2x128xf32> to vector<2x2x128xf32>
    %62 = vector.extract_strided_slice %9 {offsets = [0, 3, 0, 0], sizes = [2, 1, 2, 128], strides = [1, 1, 1, 1]} : vector<2x4x2x128xf32> to vector<2x1x2x128xf32>
    %63 = vector.shape_cast %62 : vector<2x1x2x128xf32> to vector<2x2x128xf32>
    %64 = arith.addf %49, %53 : vector<2x2x128xf32>
    %65 = arith.addf %51, %55 : vector<2x2x128xf32>
    %66 = arith.mulf %64, %65 : vector<2x2x128xf32>
    %67 = arith.addf %57, %61 : vector<2x2x128xf32>
    %68 = arith.addf %59, %63 : vector<2x2x128xf32>
    %69 = arith.mulf %67, %68 : vector<2x2x128xf32>
    %70 = arith.minimumf %51, %59 : vector<2x2x128xf32>
    %71 = arith.minimumf %55, %63 : vector<2x2x128xf32>
    %72 = arith.addf %70, %71 : vector<2x2x128xf32>
    %73 = arith.minimumf %49, %57 : vector<2x2x128xf32>
    %74 = arith.minimumf %53, %61 : vector<2x2x128xf32>
    %75 = arith.addf %73, %74 : vector<2x2x128xf32>
    %76 = arith.mulf %72, %75 : vector<2x2x128xf32>
    %77 = arith.addf %66, %69 : vector<2x2x128xf32>
    %78 = arith.subf %77, %76 : vector<2x2x128xf32>
    %cst_16 = arith.constant 1.000000e+00 : f32
    %79 = vector.broadcast %cst_16 : f32 to vector<2x2x128xf32>
    %80 = arith.addf %76, %79 : vector<2x2x128xf32>
    %cst_17 = arith.constant 1.000000e+00 : f32
    %81 = vector.broadcast %cst_17 : f32 to vector<2x2x128xf32>
    %82 = arith.addf %78, %81 : vector<2x2x128xf32>
    %83 = arith.divf %80, %82 : vector<2x2x128xf32>
    %84 = math.log %83 : vector<2x2x128xf32>
    %cst_18 = arith.constant 0.000000e+00 : f32
    %85 = vector.broadcast %cst_18 : f32 to vector<2x2x128xf32>
    %86 = arith.subf %85, %84 : vector<2x2x128xf32>
    %cst_19 = arith.constant dense<0.000000e+00> : vector<2x128xf32>
    %87 = vector.multi_reduction <add>, %86, %cst_19 [0] : vector<2x2x128xf32> to vector<2x128xf32>
    %cst_20 = arith.constant dense<0.000000e+00> : vector<2x128xf32>
    %88 = vector.multi_reduction <add>, %43, %cst_20 [0] : vector<2x2x128xf32> to vector<2x128xf32>
    %89 = arith.mulf %87, %88 : vector<2x128xf32>
    %90 = vector.shape_cast %89 : vector<2x128xf32> to vector<1x2x128xf32>
    %cst_21 = arith.constant dense<0.000000e+00> : vector<1xf32>
    %91 = vector.multi_reduction <add>, %90, %cst_21 [1, 2] : vector<1x2x128xf32> to vector<1xf32>
    %92 = vector.shape_cast %91 : vector<1xf32> to vector<1x1x1xf32>
    %93 = vector.extract %92[0, 0, 0] : f32 from vector<1x1x1xf32>
    %94 = arith.subf %9, %7 : vector<2x4x2x128xf32>
    %95 = math.absf %94 : vector<2x4x2x128xf32>
    %cst_22 = arith.constant 1.000000e+00 : f32
    %96 = vector.broadcast %cst_22 : f32 to vector<2x4x2x128xf32>
    %97 = arith.cmpf olt, %95, %96 : vector<2x4x2x128xf32>
    %cst_23 = arith.constant 5.000000e-01 : f32
    %98 = vector.broadcast %cst_23 : f32 to vector<2x4x2x128xf32>
    %99 = arith.mulf %98, %94 : vector<2x4x2x128xf32>
    %100 = arith.mulf %99, %94 : vector<2x4x2x128xf32>
    %cst_24 = arith.constant 5.000000e-01 : f32
    %101 = vector.broadcast %cst_24 : f32 to vector<2x4x2x128xf32>
    %102 = arith.subf %95, %101 : vector<2x4x2x128xf32>
    %103 = arith.select %97, %100, %102 : vector<2x4x2x128xi1>, vector<2x4x2x128xf32>
    %104 = vector.shape_cast %43 : vector<2x2x128xf32> to vector<2x1x2x128xf32>
    %105 = vector.broadcast %104 : vector<2x1x2x128xf32> to vector<2x4x2x128xf32>
    %106 = arith.mulf %103, %105 : vector<2x4x2x128xf32>
    %107 = vector.shape_cast %106 : vector<2x4x2x128xf32> to vector<1x2x4x2x128xf32>
    %cst_25 = arith.constant dense<0.000000e+00> : vector<1xf32>
    %108 = vector.multi_reduction <add>, %107, %cst_25 [1, 2, 3, 4] : vector<1x2x4x2x128xf32> to vector<1xf32>
    %109 = vector.shape_cast %108 : vector<1xf32> to vector<1x1x1x1x1xf32>
    %110 = vector.extract %109[0, 0, 0, 0, 0] : f32 from vector<1x1x1x1x1xf32>
    %111 = tpu.iota {dimensions = array<i32: 1>} : vector<1x8x128xi32>
    %c0_26 = arith.constant 0 : index
    %c0_27 = arith.constant 0 : index
    %c0_28 = arith.constant 0 : index
    %112 = vector.load %arg4[%c0_26, %c0_27, %c0_28] : memref<1x8x128xf32, #tpu.memory_space<vmem>>, vector<1x8x128xf32>
    %c0_i32_29 = arith.constant 0 : i32
    %113 = vector.broadcast %c0_i32_29 : i32 to vector<1x8x128xi32>
    %114 = arith.cmpi eq, %111, %113 : vector<1x8x128xi32>
    %cst_30 = arith.constant 0.000000e+00 : f32
    %115 = vector.broadcast %39 : f32 to vector<1x8x128xf32>
    %116 = vector.broadcast %cst_30 : f32 to vector<1x8x128xf32>
    %117 = arith.select %114, %115, %116 : vector<1x8x128xi1>, vector<1x8x128xf32>
    %c1_i32 = arith.constant 1 : i32
    %118 = vector.broadcast %c1_i32 : i32 to vector<1x8x128xi32>
    %119 = arith.cmpi eq, %111, %118 : vector<1x8x128xi32>
    %cst_31 = arith.constant 0.000000e+00 : f32
    %120 = vector.broadcast %93 : f32 to vector<1x8x128xf32>
    %121 = vector.broadcast %cst_31 : f32 to vector<1x8x128xf32>
    %122 = arith.select %119, %120, %121 : vector<1x8x128xi1>, vector<1x8x128xf32>
    %123 = arith.addf %117, %122 : vector<1x8x128xf32>
    %c2_i32 = arith.constant 2 : i32
    %124 = vector.broadcast %c2_i32 : i32 to vector<1x8x128xi32>
    %125 = arith.cmpi eq, %111, %124 : vector<1x8x128xi32>
    %cst_32 = arith.constant 0.000000e+00 : f32
    %126 = vector.broadcast %47 : f32 to vector<1x8x128xf32>
    %127 = vector.broadcast %cst_32 : f32 to vector<1x8x128xf32>
    %128 = arith.select %125, %126, %127 : vector<1x8x128xi1>, vector<1x8x128xf32>
    %129 = arith.addf %123, %128 : vector<1x8x128xf32>
    %c3_i32 = arith.constant 3 : i32
    %130 = vector.broadcast %c3_i32 : i32 to vector<1x8x128xi32>
    %131 = arith.cmpi eq, %111, %130 : vector<1x8x128xi32>
    %cst_33 = arith.constant 0.000000e+00 : f32
    %132 = vector.broadcast %110 : f32 to vector<1x8x128xf32>
    %133 = vector.broadcast %cst_33 : f32 to vector<1x8x128xf32>
    %134 = arith.select %131, %132, %133 : vector<1x8x128xi1>, vector<1x8x128xf32>
    %135 = arith.addf %129, %134 : vector<1x8x128xf32>
    %136 = arith.addf %112, %135 : vector<1x8x128xf32>
    %c0_34 = arith.constant 0 : index
    %c0_35 = arith.constant 0 : index
    %c0_36 = arith.constant 0 : index
    %137 = vector.load %arg4[%c0_34, %c0_35, %c0_36] : memref<1x8x128xf32, #tpu.memory_space<vmem>>, vector<1x8x128xf32>
    tpu.vector_store %arg4[%c0_34, %c0_35, %c0_36], %136 {strides = array<i32>} : memref<1x8x128xf32, #tpu.memory_space<vmem>>, vector<1x8x128xf32>,
    return
  }
  func.func @transform_0(%arg0: i32, %arg1: i32) -> (i32, i32, i32, i32) {
    %c1_i32 = arith.constant 1 : i32
    %0 = arith.muli %arg0, %c1_i32 : i32
    %1 = arith.addi %0, %arg1 : i32
    %c0_i32 = arith.constant 0 : i32
    %c0_i32_0 = arith.constant 0 : i32
    %c0_i32_1 = arith.constant 0 : i32
    %c0_i32_2 = arith.constant 0 : i32
    return %c0_i32, %c0_i32_0, %1, %c0_i32_1 : i32, i32, i32, i32
  }
  func.func @transform_1(%arg0: i32, %arg1: i32) -> (i32, i32, i32, i32) {
    %c1_i32 = arith.constant 1 : i32
    %0 = arith.muli %arg0, %c1_i32 : i32
    %1 = arith.addi %0, %arg1 : i32
    %c0_i32 = arith.constant 0 : i32
    %c0_i32_0 = arith.constant 0 : i32
    %c0_i32_1 = arith.constant 0 : i32
    %c0_i32_2 = arith.constant 0 : i32
    return %c0_i32, %c0_i32_0, %1, %c0_i32_1 : i32, i32, i32, i32
  }
  func.func @transform_2(%arg0: i32, %arg1: i32) -> (i32, i32, i32) {
    %c0_i32 = arith.constant 0 : i32
    %c0_i32_0 = arith.constant 0 : i32
    %c0_i32_1 = arith.constant 0 : i32
    return %arg0, %c0_i32, %c0_i32_0 : i32, i32, i32
  }
}

</mosaic_0001>

<llo_original>
// kernel: multilabel_east_loss.1
$region0: #{multilabel_east_loss.1}
  #allocation0 [shape = 'u32[]', space=smem, size = 0x4, offset = 0x4, fixed_abs, tag = 'smem constant byte address 0x4 - core index']
  #allocation1 [shape = 'u32[144,128]{1,0:T(1,128)}', space=vmem, size = 0x12000, scoped, tag = 'internal scratch']
  %s0 = inlined_call_operand.vmem [shape: f32[2,5,2,128], index: 0, kind: input, shape index: {}]
  %s1 = inlined_call_operand.vmem [shape: f32[2,7,2,128], index: 1, kind: input, shape index: {}]
  %s2 = inlined_call_operand.vmem [shape: f32[1,8,128], index: 2, kind: output, shape index: {}]
  %s3 = sld [smem:[#allocation0]]
  $region22: #{multilabel_east_loss.1} parent=0
    _
  %s5 = ssub.s32 1, %s3
  %s6 = scalar_select 0, %s5, %s3
  // Predicated region
  $region2: #{multilabel_east_loss.1} parent=0 // pred_check
    _
  $region3: #{multilabel_east_loss.1} parent=0 // pred_check_branch
    %8 = sbr.rel (0) target = $region5
  $region4: #{multilabel_east_loss.1} parent=0 // pred_region
    %s9 = sadd.s32 0, 0
    %p10 = scmp.lt.s32.totalorder %s9, 0
    %s11 = scalar_select %p10, %s9, 0
    %s12 = smul.addr %s11, 2
    %s13 = scalar_lea.vmem %s0, %s12
    %s14 = sadd.s32 0, 0
  $region5: #{multilabel_east_loss.1} parent=0 // pred_fallthru
    _
  // Predicated region
  $region6: #{multilabel_east_loss.1} parent=0 // pred_check
    _
  $region7: #{multilabel_east_loss.1} parent=0 // pred_check_branch
    %16 = sbr.rel (0) target = $region9
  $region8: #{multilabel_east_loss.1} parent=0 // pred_region
    %s17 = sadd.s32 0, 0
    %p18 = scmp.lt.s32.totalorder %s17, 0
    %s19 = scalar_select %p18, %s17, 0
    %s20 = smul.addr %s19, 2
    %s21 = scalar_lea.vmem %s1, %s20
    %s22 = sadd.s32 0, 0
  $region9: #{multilabel_east_loss.1} parent=0 // pred_fallthru
    _
  %s23 = sadd.s32 0, 0
  %p24 = scmp.lt.s32.totalorder %s23, 0
  %s25 = scalar_select %p24, %s23, 0
  %s26 = smul.addr %s25, 2
  %s27 = scalar_lea.vmem %s0, %s26
  %s28 = sadd.s32 0, 0
  %p29 = scmp.lt.s32.totalorder %s28, 0
  %s30 = scalar_select %p29, %s28, 0
  %s31 = smul.addr %s30, 2
  %s32 = scalar_lea.vmem %s1, %s31
  %s33 = sadd.s32 0, 0
  %p34 = scmp.lt.s32.totalorder %s33, 0
  %s35 = scalar_select %p34, %s33, 0
  %s36 = smul.addr %s35, 2
  %s37 = scalar_lea.vmem %s0, %s36
  %s38 = sadd.s32 0, 0
  %s39 = sadd.s32 0, 0
  %p40 = scmp.lt.s32.totalorder %s39, 0
  %s41 = scalar_select %p40, %s39, 0
  %s42 = smul.addr %s41, 2
  %s43 = scalar_lea.vmem %s1, %s42
  %s44 = sadd.s32 0, 0
  %p45 = scmp.eq.s32.totalorder 0, 0
  // Predicated region
  $region10: #{multilabel_east_loss.1} parent=0 // pred_check
    %p46 = pneg %p45
  $region11: #{multilabel_east_loss.1} parent=0 // pred_check_branch
    %48 = sbr.rel (%p46) target = $region13
  $region12: #{multilabel_east_loss.1} parent=0 // pred_region
    %49 = vst [vmem:[%s2] sm:$0xff] 0.0
  $region13: #{multilabel_east_loss.1} parent=0 // pred_fallthru
    _
  %v50 = vld [vmem:[%s37] sm:$0x3]
  %v51 = vld [vmem:[%s37 + $0x2] sm:$0x3]
  %v52 = vld [vmem:[%s37 + $0x4] sm:$0x3]
  %v53 = vld [vmem:[%s37 + $0x6] sm:$0x3]
  %v54 = vld [vmem:[%s37 + $0x8] sm:$0x3]
  %v55 = vld [vmem:[%s37 + $0xa] sm:$0x3]
  %v56 = vld [vmem:[%s37 + $0xc] sm:$0x3]
  %v57 = vld [vmem:[%s37 + $0xe] sm:$0x3]
  %v58 = vld [vmem:[%s37 + $0x10] sm:$0x3]
  %v59 = vld [vmem:[%s37 + $0x12] sm:$0x3]
  %v60 = vld [vmem:[%s43] sm:$0x3]
  %v61 = vld [vmem:[%s43 + $0x2] sm:$0x3]
  %v62 = vld [vmem:[%s43 + $0x4] sm:$0x3]
  %v63 = vld [vmem:[%s43 + $0x6] sm:$0x3]
  %v64 = vld [vmem:[%s43 + $0x8] sm:$0x3]
  %v65 = vld [vmem:[%s43 + $0xa] sm:$0x3]
  %v66 = vld [vmem:[%s43 + $0xc] sm:$0x3]
  %v67 = vld [vmem:[%s43 + $0xe] sm:$0x3]
  %v68 = vld [vmem:[%s43 + $0x10] sm:$0x3]
  %v69 = vld [vmem:[%s43 + $0x12] sm:$0x3]
  %v70 = vld [vmem:[%s43 + $0x14] sm:$0x3]
  %v71 = vld [vmem:[%s43 + $0x16] sm:$0x3]
  %v72 = vld [vmem:[%s43 + $0x18] sm:$0x3]
  %v73 = vld [vmem:[%s43 + $0x1a] sm:$0x3]
  %vm74 = vcmask 1041408
  %v75 = vsel %vm74, %v60, -inf
  %v76 = vsel %vm74, %v61, -inf
  %v77 = vsel %vm74, %v62, -inf
  %v78 = vmax.f32 %v75, %v77
  %v79 = vmax.f32 %v78, %v76
  %v80 = vsel %vm74, %v67, -inf
  %v81 = vsel %vm74, %v68, -inf
  %v82 = vsel %vm74, %v69, -inf
  %v83 = vmax.f32 %v80, %v82
  %v84 = vmax.f32 %v83, %v81
  %v85 = vsub.f32 %v60, %v79
  %v86 = vsub.f32 %v61, %v79
  %v87 = vsub.f32 %v62, %v79
  %v88 = vsub.f32 %v67, %v84
  %v89 = vsub.f32 %v68, %v84
  %v90 = vsub.f32 %v69, %v84
  %v91 = vmul.f32 %v85, 1.442695
  %v92 = vpow.pop %v91
  %v93 = vmul.f32 %v86, 1.442695
  %v94 = vpow.pop %v93
  %v95 = vmul.f32 %v87, 1.442695
  %v96 = vpow.pop %v95
  %v97 = vmul.f32 %v88, 1.442695
  %v98 = vpow.pop %v97
  %v99 = vmul.f32 %v89, 1.442695
  %v100 = vpow.pop %v99
  %v101 = vmul.f32 %v90, 1.442695
  %v102 = vpow.pop %v101
  %v103 = vsel %vm74, %v92, 0.0
  %v104 = vsel %vm74, %v94, 0.0
  %v105 = vadd.f32 %v103, %v104
  %v106 = vsel %vm74, %v96, 0.0
  %v107 = vadd.f32 %v105, %v106
  %v108 = vsel %vm74, %v98, 0.0
  %v109 = vsel %vm74, %v100, 0.0
  %v110 = vadd.f32 %v108, %v109
  %v111 = vsel %vm74, %v102, 0.0
  %v112 = vadd.f32 %v110, %v111
  %v113 = vcvt.f32.s32.to.zero.pseudo %v50
  %v114 = vcvt.f32.s32.to.zero.pseudo %v55
  %vm115 = vcmp.eq.s32.totalorder %v113, 0
  %vm116 = vcmp.eq.s32.totalorder %v113, 1
  %vm117 = vcmp.eq.s32.totalorder %v113, 2
  %vm118 = vcmp.eq.s32.totalorder %v114, 0
  %vm119 = vcmp.eq.s32.totalorder %v114, 1
  %vm120 = vcmp.eq.s32.totalorder %v114, 2
  %v121 = vsel %vm115, 1, 0
  %v122 = vsel %vm116, 1, 0
  %v123 = vsel %vm117, 1, 0
  %v124 = vsel %vm118, 1, 0
  %v125 = vsel %vm119, 1, 0
  %v126 = vsel %vm120, 1, 0
  %v127 = vcvt.s32.f32 %v121
  %v128 = vcvt.s32.f32 %v122
  %v129 = vcvt.s32.f32 %v123
  %v130 = vcvt.s32.f32 %v124
  %v131 = vcvt.s32.f32 %v125
  %v132 = vcvt.s32.f32 %v126
  %v133 = vmul.f32 %v127, %v85
  %v134 = vmul.f32 %v128, %v86
  %v135 = vmul.f32 %v129, %v87
  %v136 = vmul.f32 %v130, %v88
  %v137 = vmul.f32 %v131, %v89
  %v138 = vmul.f32 %v132, %v90
  %v139 = vsel %vm74, %v133, 0.0
  %v140 = vsel %vm74, %v134, 0.0
  %v141 = vadd.f32 %v139, %v140
  %v142 = vsel %vm74, %v135, 0.0
  %v143 = vadd.f32 %v141, %v142
  %v144 = vsel %vm74, %v136, 0.0
  %v145 = vsel %vm74, %v137, 0.0
  %v146 = vadd.f32 %v144, %v145
  %v147 = vsel %vm74, %v138, 0.0
  %v148 = vadd.f32 %v146, %v147
  %v149 = vmul.f32 %v127, %v92
  %v150 = vmul.f32 %v128, %v94
  %v151 = vmul.f32 %v129, %v96
  %v152 = vmul.f32 %v130, %v98
  %v153 = vmul.f32 %v131, %v100
  %v154 = vmul.f32 %v132, %v102
  %v155 = vsel %vm74, %v149, 0.0
  %v156 = vsel %vm74, %v150, 0.0
  %v157 = vadd.f32 %v155, %v156
  %v158 = vsel %vm74, %v151, 0.0
  %v159 = vadd.f32 %v157, %v158
  %v160 = vsel %vm74, %v152, 0.0
  %v161 = vsel %vm74, %v153, 0.0
  %v162 = vadd.f32 %v160, %v161
  %v163 = vsel %vm74, %v154, 0.0
  %v164 = vadd.f32 %v162, %v163
  %v165 = vrcp.pop %v107
  %v166 = vmul.f32 %v159, %v165
  %v167 = vrcp.pop %v112
  %v168 = vmul.f32 %v164, %v167
  %v169 = vlog2.pop %v107
  %v170 = vmul.f32 %v169, 0.6931472
  %v171 = vlog2.pop %v112
  %v172 = vmul.f32 %v171, 0.6931472
  %v173 = vsub.f32 %v143, %v170
  %v174 = vsub.f32 %v148, %v172
  %v175 = vsub.f32 1.0, %v166
  %v176 = vsub.f32 1.0, %v168
  %v177 = vmul.f32 %v175, %v175
  %v178 = vmul.f32 %v176, %v176
  %v179 = vmul.f32 %v177, -0.25
  %v180 = vmul.f32 %v178, -0.25
  %v181 = vmul.f32 %v179, %v173
  %v182 = vmul.f32 %v180, %v174
  %v183 = vsel %vm74, %v181, 0.0
  %v184 = vsel %vm74, %v182, 0.0
  %v185 = vadd.f32 %v183, %v184
  %186 = vadd.xlane.f32.xlu0 %v185
  %v187 = vpop.xlane.xlu0 %186
  %v188 = vrot.slane %v187, 4
  %v189 = vadd.f32 %v187, %v188
  %v190 = vrot.slane %v189, 2
  %v191 = vadd.f32 %v189, %v190
  %v192 = vrot.slane %v191, 1
  %v193 = vadd.f32 %v191, %v192
  %s194 = vtos %v193
  %vm195 = vcmp.gt.f32.partialorder %v50, 0.0
  %vm196 = vcmp.gt.f32.partialorder %v55, 0.0
  %v197 = vsel %vm195, 1, 0
  %v198 = vsel %vm196, 1, 0
  %v199 = vcvt.s32.f32 %v197
  %v200 = vcvt.s32.f32 %v198
  %v201 = vsel %vm74, %v199, 0.0
  %v202 = vsel %vm74, %v200, 0.0
  %v203 = vadd.f32 %v201, %v202
  %204 = vadd.xlane.f32.xlu0 %v203
  %v205 = vpop.xlane.xlu0 %204
  %v206 = vrot.slane %v205, 4
  %v207 = vadd.f32 %v205, %v206
  %v208 = vrot.slane %v207, 2
  %v209 = vadd.f32 %v207, %v208
  %v210 = vrot.slane %v209, 1
  %v211 = vadd.f32 %v209, %v210
  %s212 = vtos %v211
  %v213 = vadd.f32 %v51, %v53
  %v214 = vadd.f32 %v56, %v58
  %v215 = vadd.f32 %v52, %v54
  %v216 = vadd.f32 %v57, %v59
  %v217 = vmul.f32 %v213, %v215
  %v218 = vmul.f32 %v214, %v216
  %v219 = vadd.f32 %v63, %v65
  %v220 = vadd.f32 %v70, %v72
  %v221 = vadd.f32 %v64, %v66
  %v222 = vadd.f32 %v71, %v73
  %v223 = vmul.f32 %v219, %v221
  %v224 = vmul.f32 %v220, %v222
  %v225 = vmin.f32 %v52, %v64
  %v226 = vmin.f32 %v57, %v71
  %v227 = vmin.f32 %v54, %v66
  %v228 = vmin.f32 %v59, %v73
  %v229 = vadd.f32 %v225, %v227
  %v230 = vadd.f32 %v226, %v228
  %v231 = vmin.f32 %v51, %v63
  %v232 = vmin.f32 %v56, %v70
  %v233 = vmin.f32 %v53, %v65
  %v234 = vmin.f32 %v58, %v72
  %v235 = vadd.f32 %v231, %v233
  %v236 = vadd.f32 %v232, %v234
  %v237 = vmul.f32 %v229, %v235
  %v238 = vmul.f32 %v230, %v236
  %v239 = vadd.f32 %v217, %v223
  %v240 = vadd.f32 %v218, %v224
  %v241 = vsub.f32 %v239, %v237
  %v242 = vsub.f32 %v240, %v238
  %v243 = vadd.f32 %v237, 1.0
  %v244 = vadd.f32 %v238, 1.0
  %v245 = vadd.f32 %v241, 1.0
  %v246 = vadd.f32 %v242, 1.0
  %v247 = vrcp.pop %v245
  %v248 = vmul.f32 %v243, %v247
  %v249 = vrcp.pop %v246
  %v250 = vmul.f32 %v244, %v249
  %v251 = vlog2.pop %v248
  %v252 = vmul.f32 %v251, 0.6931472
  %v253 = vlog2.pop %v250
  %v254 = vmul.f32 %v253, 0.6931472
  %v255 = vsub.f32 0.0, %v252
  %v256 = vsub.f32 0.0, %v254
  %v257 = vsel %vm74, %v255, 0.0
  %v258 = vsel %vm74, %v256, 0.0
  %v259 = vadd.f32 %v257, %v258
  %v260 = vmul.f32 %v259, %v203
  %v261 = vsel %vm74, %v260, 0.0
  %262 = vadd.xlane.f32.xlu0 %v261
  %v263 = vpop.xlane.xlu0 %262
  %v264 = vrot.slane %v263, 4
  %v265 = vadd.f32 %v263, %v264
  %v266 = vrot.slane %v265, 2
  %v267 = vadd.f32 %v265, %v266
  %v268 = vrot.slane %v267, 1
  %v269 = vadd.f32 %v267, %v268
  %s270 = vtos %v269
  %v271 = vsub.f32 %v63, %v51
  %v272 = vsub.f32 %v64, %v52
  %v273 = vsub.f32 %v65, %v53
  %v274 = vsub.f32 %v66, %v54
  %v275 = vsub.f32 %v70, %v56
  %v276 = vsub.f32 %v71, %v57
  %v277 = vsub.f32 %v72, %v58
  %v278 = vsub.f32 %v73, %v59
  %v279 = vand.u32 2147483647, %v271
  %v280 = vand.u32 2147483647, %v272
  %v281 = vand.u32 2147483647, %v273
  %v282 = vand.u32 2147483647, %v274
  %v283 = vand.u32 2147483647, %v275
  %v284 = vand.u32 2147483647, %v276
  %v285 = vand.u32 2147483647, %v277
  %v286 = vand.u32 2147483647, %v278
  %vm287 = vcmp.lt.f32.partialorder %v279, 1.0
  %vm288 = vcmp.lt.f32.partialorder %v280, 1.0
  %vm289 = vcmp.lt.f32.partialorder %v281, 1.0
  %vm290 = vcmp.lt.f32.partialorder %v282, 1.0
  %vm291 = vcmp.lt.f32.partialorder %v283, 1.0
  %vm292 = vcmp.lt.f32.partialorder %v284, 1.0
  %vm293 = vcmp.lt.f32.partialorder %v285, 1.0
  %vm294 = vcmp.lt.f32.partialorder %v286, 1.0
  %v295 = vmul.f32 %v271, 0.5
  %v296 = vmul.f32 %v272, 0.5
  %v297 = vmul.f32 %v273, 0.5
  %v298 = vmul.f32 %v274, 0.5
  %v299 = vmul.f32 %v275, 0.5
  %v300 = vmul.f32 %v276, 0.5
  %v301 = vmul.f32 %v277, 0.5
  %v302 = vmul.f32 %v278, 0.5
  %v303 = vmul.f32 %v295, %v271
  %v304 = vmul.f32 %v296, %v272
  %v305 = vmul.f32 %v297, %v273
  %v306 = vmul.f32 %v298, %v274
  %v307 = vmul.f32 %v299, %v275
  %v308 = vmul.f32 %v300, %v276
  %v309 = vmul.f32 %v301, %v277
  %v310 = vmul.f32 %v302, %v278
  %v311 = vsub.f32 %v279, 0.5
  %v312 = vsub.f32 %v280, 0.5
  %v313 = vsub.f32 %v281, 0.5
  %v314 = vsub.f32 %v282, 0.5
  %v315 = vsub.f32 %v283, 0.5
  %v316 = vsub.f32 %v284, 0.5
  %v317 = vsub.f32 %v285, 0.5
  %v318 = vsub.f32 %v286, 0.5
  %v319 = vsel %vm287, %v303, %v311
  %v320 = vsel %vm288, %v304, %v312
  %v321 = vsel %vm289, %v305, %v313
  %v322 = vsel %vm290, %v306, %v314
  %v323 = vsel %vm291, %v307, %v315
  %v324 = vsel %vm292, %v308, %v316
  %v325 = vsel %vm293, %v309, %v317
  %v326 = vsel %vm294, %v310, %v318
  %v327 = vmul.f32 %v319, %v199
  %v328 = vmul.f32 %v320, %v199
  %v329 = vmul.f32 %v321, %v199
  %v330 = vmul.f32 %v322, %v199
  %v331 = vmul.f32 %v323, %v200
  %v332 = vmul.f32 %v324, %v200
  %v333 = vmul.f32 %v325, %v200
  %v334 = vmul.f32 %v326, %v200
  %v335 = vsel %vm74, %v327, 0.0
  %v336 = vsel %vm74, %v328, 0.0
  %v337 = vadd.f32 %v335, %v336
  %v338 = vsel %vm74, %v329, 0.0
  %v339 = vadd.f32 %v337, %v338
  %v340 = vsel %vm74, %v330, 0.0
  %v341 = vadd.f32 %v339, %v340
  %v342 = vsel %vm74, %v331, 0.0
  %v343 = vadd.f32 %v341, %v342
  %v344 = vsel %vm74, %v332, 0.0
  %v345 = vadd.f32 %v343, %v344
  %v346 = vsel %vm74, %v333, 0.0
  %v347 = vadd.f32 %v345, %v346
  %v348 = vsel %vm74, %v334, 0.0
  %v349 = vadd.f32 %v347, %v348
  %350 = vadd.xlane.f32.xlu0 %v349
  %v351 = vpop.xlane.xlu0 %350
  %v352 = vrot.slane %v351, 4
  %v353 = vadd.f32 %v351, %v352
  %v354 = vrot.slane %v353, 2
  %v355 = vadd.f32 %v353, %v354
  %v356 = vrot.slane %v355, 1
  %v357 = vadd.f32 %v355, %v356
  %s358 = vtos %v357
  %v359 = vlaneseq
  %v360 = vshrl.u32 %v359, 7
  %v361 = vld [vmem:[%s2] sm:$0xff]
  %vm362 = vcmp.eq.s32.totalorder %v360, 0
  %v363 = vstv %s194
  %v364 = vsel %vm362, %v363, 0.0
  %vm365 = vcmp.eq.s32.totalorder %v360, 1
  %v366 = vstv %s270
  %v367 = vsel %vm365, %v366, 0.0
  %v368 = vadd.f32 %v364, %v367
  %vm369 = vcmp.eq.s32.totalorder %v360, 2
  %v370 = vstv %s212
  %v371 = vsel %vm369, %v370, 0.0
  %v372 = vadd.f32 %v368, %v371
  %vm373 = vcmp.eq.s32.totalorder %v360, 3
  %v374 = vstv %s358
  %v375 = vsel %vm373, %v374, 0.0
  %v376 = vadd.f32 %v372, %v375
  %v377 = vadd.f32 %v361, %v376
  %378 = vst [vmem:[%s2] sm:$0xff] %v377
  // Predicated region
  $region14: #{multilabel_east_loss.1} parent=0 // pred_check
    _
  $region15: #{multilabel_east_loss.1} parent=0 // pred_check_branch
    %380 = sbr.rel (0) target = $region17
  $region16: #{multilabel_east_loss.1} parent=0 // pred_region
    _
  $region17: #{multilabel_east_loss.1} parent=0 // pred_fallthru
    _
  // Predicated region
  $region18: #{multilabel_east_loss.1} parent=0 // pred_check
    _
  $region19: #{multilabel_east_loss.1} parent=0 // pred_check_branch
    %382 = sbr.rel (0) target = $region21
  $region20: #{multilabel_east_loss.1} parent=0 // pred_region
    _
  $region21: #{multilabel_east_loss.1} parent=0 // pred_fallthru
    _

</llo_original>
